<compile_context>
chip_gen: v7x
topology: tpu7x:2x2x1
jax: 0.10.0
libtpu: 0.0.40
codegen_flags: <defaults>
</compile_context>

<pallas_src>
import functools

import jax
import jax.numpy as jnp
from jax import lax
from jax.experimental import pallas as pl
from jax.experimental.pallas import tpu as pltpu

_MIB = 1024 * 1024


def _round_up(x, m):
    return (x + m - 1) // m * m


def _detect_vmem_limit_bytes():
    """Generation-aware VMEM budget: ~48 MiB on v7x (64 MiB/TC), 96 MiB on v5e/v6e."""
    phys = 64 * _MIB  # conservative default = v7x per-TensorCore VMEM
    try:
        info = pltpu.get_tpu_info()
        for attr in ("vmem_capacity_bytes", "vmem_size_bytes", "vmem_bytes"):
            val = getattr(info, attr, None)
            if val:
                phys = int(val)
                break
    except Exception:
        pass
    return int(max(32 * _MIB, min(phys - 16 * _MIB, 96 * _MIB)))


_VMEM_LIMIT_BYTES = _detect_vmem_limit_bytes()


def _mdn_fused_kernel(x_ref, w_ref, b_ref, pi_ref, sm_ref, *,
                      num_gaussians, gd, pi_pad, bias):
    """One M-tile of the fused MDN head.

    x_ref  : (TM, Din)     f32   activations tile (cast to bf16 in-kernel)
    w_ref  : (Din, Npad)   bf16  [w_pi | 0pad | w_sigma | w_mu | 0pad]
    b_ref  : (1,  Npad)    f32   biases, same lane layout
    pi_ref : (TM, PI_PAD)  f32   log softmax(pi)  (valid lanes: [:G])
    sm_ref : (TM, SM_PAD)  bf16  [log_sigma | mu | 0pad]
    """
    # Free VPU cast under the MXU op; avoids a host-side bf16 copy of x.
    x = x_ref[...].astype(w_ref.dtype)
    y = jnp.dot(x, w_ref[...], preferred_element_type=jnp.float32)
    y = y + b_ref[...]                                   # (TM, Npad) f32

    # ---- pi head: static 128-lane-group slice; masked log_softmax over G lanes
    y_pi = y[:, :pi_pad]
    if bias != 0.0:                                      # static fast path
        y_pi = y_pi * (1.0 + bias)
    lane = lax.broadcasted_iota(jnp.int32, y_pi.shape, 1)
    pi_masked = jnp.where(lane < num_gaussians, y_pi, -jnp.inf)
    m = jnp.max(pi_masked, axis=-1, keepdims=True)
    lse = jnp.log(jnp.sum(jnp.exp(pi_masked - m), axis=-1, keepdims=True))
    pi_ref[...] = y_pi - m - lse                         # f32 lane-dense store

    # ---- sigma / mu heads: [log_sigma | mu | pad]; single bf16 lane-dense store
    y_sm = y[:, pi_pad:]
    if bias != 0.0:                                      # static fast path
        lane_sm = lax.broadcasted_iota(jnp.int32, y_sm.shape, 1)
        y_sm = jnp.where(lane_sm < gd, y_sm - bias, y_sm)
    sm_ref[...] = y_sm.astype(sm_ref.dtype)


def prepare_params(params, *, num_gaussians, out_dim, compute_dtype=jnp.bfloat16):
    """One-time fusion of the three Linear heads into lane-dense slabs.

    Lane layout: [ w_pi (G) | 0-pad to PI_PAD | w_sigma (GD) | w_mu (GD) |
                   0-pad to PI_PAD + SM_PAD ],  PI_PAD/SM_PAD multiples of 128.
    Build once and reuse; rebuilding per forward call costs an extra HBM pass.
    """
    w_pi, b_pi, w_sg, b_sg, w_mu, b_mu = params
    din = w_pi.shape[0]
    G, GD = num_gaussians, num_gaussians * out_dim
    pi_pad = _round_up(G, 128)
    sm_pad = _round_up(2 * GD, 128)
    n_pad = pi_pad + sm_pad

    w_cat = jnp.zeros((din, n_pad), jnp.float32)
    w_cat = w_cat.at[:, :G].set(w_pi)
    w_cat = w_cat.at[:, pi_pad:pi_pad + GD].set(w_sg)
    w_cat = w_cat.at[:, pi_pad + GD:pi_pad + 2 * GD].set(w_mu)
    b_cat = jnp.zeros((1, n_pad), jnp.float32)
    b_cat = b_cat.at[:, :G].set(b_pi.reshape(1, G))
    b_cat = b_cat.at[:, pi_pad:pi_pad + GD].set(b_sg.reshape(1, GD))
    b_cat = b_cat.at[:, pi_pad + GD:pi_pad + 2 * GD].set(b_mu.reshape(1, GD))
    return w_cat.astype(compute_dtype), b_cat


def _choose_tm(block_rows, m, din, pi_pad, sm_pad, vmem_limit):
    """Largest multiple-of-16 M tile that keeps the pipelined set in VMEM."""
    n_pad = pi_pad + sm_pad
    tm = _round_up(max(1, min(block_rows, m)), 16)
    # Double-buffered weights/bias (grid-invariant but still 2 buffers) ...
    fixed = 2 * din * n_pad * 2 + 2 * 8 * n_pad * 4
    # ... plus double-buffered x / pi / sm tiles and rough f32 intermediates.
    per_row = 2 * (din * 4 + pi_pad * 4 + sm_pad * 2) + 2 * n_pad * 4
    budget = int(0.7 * vmem_limit)
    while tm > 16 and fixed + tm * per_row > budget:
        tm = _round_up(tm // 2, 16)
    return tm


@functools.partial(
    jax.jit,
    static_argnames=("num_gaussians", "out_dim", "bias", "block_rows", "sm_dtype"))
def mdn_layer_forward(x, w_cat, b_cat, *, num_gaussians, out_dim, bias=0.0,
                      block_rows=1024, sm_dtype=jnp.bfloat16):
    """x: (B, T, Din) f32; (w_cat, b_cat) from prepare_params().

    Returns (log_pi, log_sigma, mu, rho=None) with PyTorch MDNLayer semantics
    (dim_wise=False, with_rho=False).  log_pi is f32; log_sigma/mu use sm_dtype
    (bf16 by default to halve output HBM traffic; pass jnp.float32 if needed).
    Call inside the consumer's jit so the final slice/reshape fuse instead of
    re-reading the fused slabs from HBM.
    """
    B, T, Din = x.shape
    G, Dout = num_gaussians, out_dim
    GD = G * Dout
    pi_pad = _round_up(G, 128)
    sm_pad = _round_up(2 * GD, 128)
    n_pad = pi_pad + sm_pad
    assert w_cat.shape == (Din, n_pad) and b_cat.shape == (1, n_pad)

    M = B * T
    x2 = x.reshape(M, Din)                       # no host-side cast / pad of x
    TM = _choose_tm(block_rows, M, Din, pi_pad, sm_pad, _VMEM_LIMIT_BYTES)

    kernel = functools.partial(_mdn_fused_kernel, num_gaussians=G, gd=GD,
                               pi_pad=pi_pad, bias=float(bias))

    # TODO(synk): on v7x, if xprof shows one TensorCore idle, switch the M axis
    # to pltpu.CORE_PARALLEL (or split M with an explicit leading core axis).
    pi_out, sm_out = pl.pallas_call(
        kernel,
        out_shape=(jax.ShapeDtypeStruct((M, pi_pad), jnp.float32),
                   jax.ShapeDtypeStruct((M, sm_pad), sm_dtype)),
        grid=(pl.cdiv(M, TM),),                  # ragged last tile: clipped store
        in_specs=[
            pl.BlockSpec((TM, Din), lambda i: (i, 0)),     # streamed x tiles
            pl.BlockSpec((Din, n_pad), lambda i: (0, 0)),  # resident weights
            pl.BlockSpec((1, n_pad), lambda i: (0, 0)),    # resident biases
        ],
        out_specs=(
            pl.BlockSpec((TM, pi_pad), lambda i: (i, 0)),  # f32 log_pi slab
            pl.BlockSpec((TM, sm_pad), lambda i: (i, 0)),  # bf16 sigma|mu slab
        ),
        compiler_params=pltpu.CompilerParams(
            dimension_semantics=("parallel",),
            vmem_limit_bytes=_VMEM_LIMIT_BYTES,
        ),
    )(x2, w_cat, b_cat)

    log_pi = pi_out[:, :G].reshape(B, T, G)
    log_sigma = sm_out[:, :GD].reshape(B, T, G, Dout)
    mu = sm_out[:, GD:2 * GD].reshape(B, T, G, Dout)
    return log_pi, log_sigma, mu, None


def init_params(key, din, dout, num_gaussians):
    """Deterministic synthetic parameters (weights stored as (in, out))."""
    G = num_gaussians
    ks = jax.random.split(key, 6)
    bound = 1.0 / jnp.sqrt(din)
    w_pi = jax.random.uniform(ks[0], (din, G), jnp.float32, -bound, bound)
    b_pi = jax.random.uniform(ks[1], (G,), jnp.float32, -bound, bound)
    w_sg = jax.random.uniform(ks[2], (din, dout * G), jnp.float32, -bound, bound)
    b_sg = jax.random.uniform(ks[3], (dout * G,), jnp.float32, -bound, bound)
    w_mu = jax.random.uniform(ks[4], (din, dout * G), jnp.float32, -bound, bound)
    b_mu = jax.random.uniform(ks[5], (dout * G,), jnp.float32, -bound, bound)
    return (w_pi, b_pi, w_sg, b_sg, w_mu, b_mu)


def _reference(x, params, *, num_gaussians, out_dim, bias=0.0,
               compute_dtype=jnp.float32):
    """Pure-JAX reference mirroring the PyTorch forward (dim_wise/with_rho off)."""
    B, T, _ = x.shape
    w_pi, b_pi, w_sg, b_sg, w_mu, b_mu = params
    xc = x.astype(compute_dtype)

    def lin(w, b):
        return jnp.dot(xc, w.astype(compute_dtype),
                       preferred_element_type=jnp.float32) + b

    log_pi = jax.nn.log_softmax(lin(w_pi, b_pi) * (1.0 + bias), axis=2)
    log_sigma = (lin(w_sg, b_sg) - bias).reshape(B, T, num_gaussians, out_dim)
    mu = lin(w_mu, b_mu).reshape(B, T, num_gaussians, out_dim)
    return log_pi, log_sigma, mu


if __name__ == "__main__":
    B, T, DIN, DOUT, G = 2, 8, 32, 2, 30

    key = jax.random.PRNGKey(0)
    kx, kp = jax.random.split(key)
    x = jax.random.normal(kx, (B, T, DIN), jnp.float32)
    params = init_params(kp, DIN, DOUT, G)
    w_cat, b_cat = prepare_params(params, num_gaussians=G, out_dim=DOUT)

    for bias in (0.0, 0.25):                       # exercise both bias paths
        log_pi, log_sigma, mu, rho = mdn_layer_forward(
            x, w_cat, b_cat, num_gaussians=G, out_dim=DOUT, bias=bias)
        jax.block_until_ready((log_pi, log_sigma, mu))

        # Precision-matched reference (bf16 matmul inputs, f32 accumulation).
        r_pi, r_sg, r_mu = _reference(x, params, num_gaussians=G, out_dim=DOUT,
                                      bias=bias, compute_dtype=jnp.bfloat16)
        # Full-f32 reference (loose tol: kernel uses bf16 MXU + bf16 sigma/mu).
        f_pi, f_sg, f_mu = _reference(x, params, num_gaussians=G, out_dim=DOUT,
                                      bias=bias)

        assert log_pi.shape == (B, T, G) and log_pi.dtype == jnp.float32
        assert log_sigma.shape == (B, T, G, DOUT)
        assert mu.shape == (B, T, G, DOUT)
        assert rho is None
        assert jnp.allclose(jnp.sum(jnp.exp(log_pi), -1), 1.0, atol=1e-3)
        assert jnp.allclose(log_pi, r_pi, atol=2e-3), "log_pi mismatch"
        assert jnp.allclose(log_sigma.astype(jnp.float32), r_sg,
                            atol=2.5e-2), "log_sigma mismatch"
        assert jnp.allclose(mu.astype(jnp.float32), r_mu,
                            atol=2.5e-2), "mu mismatch"
        assert jnp.allclose(log_pi, f_pi, atol=7.5e-2)
        assert jnp.allclose(log_sigma.astype(jnp.float32), f_sg, atol=7.5e-2)
        assert jnp.allclose(mu.astype(jnp.float32), f_mu, atol=7.5e-2)

    # Ragged / multi-block check: M=200 rows, TM=64 -> 4 grid steps, last partial.
    B2, T2, DIN2, DOUT2, G2 = 2, 100, 48, 3, 20
    kx2, kp2 = jax.random.split(jax.random.PRNGKey(1))
    x2 = jax.random.normal(kx2, (B2, T2, DIN2), jnp.float32)
    params2 = init_params(kp2, DIN2, DOUT2, G2)
    w2, b2 = prepare_params(params2, num_gaussians=G2, out_dim=DOUT2)
    lp2, ls2, mu2, _ = mdn_layer_forward(x2, w2, b2, num_gaussians=G2,
                                         out_dim=DOUT2, bias=0.0, block_rows=64)
    jax.block_until_ready((lp2, ls2, mu2))
    r_pi2, r_sg2, r_mu2 = _reference(x2, params2, num_gaussians=G2,
                                     out_dim=DOUT2, bias=0.0,
                                     compute_dtype=jnp.bfloat16)
    assert jnp.allclose(lp2, r_pi2, atol=2e-3)
    assert jnp.allclose(ls2.astype(jnp.float32), r_sg2, atol=3e-2)
    assert jnp.allclose(mu2.astype(jnp.float32), r_mu2, atol=3e-2)

    print("KERNEL_OK")
</pallas_src>

<mosaic_0001>
module attributes {stable_mosaic.version = 11 : i64} {
  func.func @_mdn_fused_kernel(%arg0: i32, %arg1: memref<16x32xf32, #tpu.memory_space<vmem>>, %arg2: memref<32x256xbf16, #tpu.memory_space<vmem>>, %arg3: memref<1x256xf32, #tpu.memory_space<vmem>>, %arg4: memref<16x128xf32, #tpu.memory_space<vmem>>, %arg5: memref<16x128xbf16, #tpu.memory_space<vmem>>) attributes {dimension_semantics = [#tpu.dimension_semantics<parallel>], iteration_bounds = array<i64: 1>, scalar_prefetch = 0 : i64, scratch_operands = 0 : i64, tpu.core_type = #tpu.core_type<tc>, window_params = [{transform_indices = @transform_0, window_bounds = array<i64: 16, 32>}, {pipeline_mode = #tpu.pipeline_mode<synchronous>, transform_indices = @transform_1, window_bounds = array<i64: 32, 256>}, {pipeline_mode = #tpu.pipeline_mode<synchronous>, transform_indices = @transform_2, window_bounds = array<i64: 1, 256>}, {transform_indices = @transform_3, window_bounds = array<i64: 16, 128>}, {transform_indices = @transform_4, window_bounds = array<i64: 16, 128>}]} {
    %c0 = arith.constant 0 : index
    %c0_0 = arith.constant 0 : index
    %0 = vector.load %arg1[%c0, %c0_0] : memref<16x32xf32, #tpu.memory_space<vmem>>, vector<16x32xf32>
    %1 = arith.truncf %0 : vector<16x32xf32> to vector<16x32xbf16>
    %c0_1 = arith.constant 0 : index
    %c0_2 = arith.constant 0 : index
    %2 = vector.load %arg2[%c0_1, %c0_2] : memref<32x256xbf16, #tpu.memory_space<vmem>>, vector<32x256xbf16>
    %cst = arith.constant dense<0.000000e+00> : vector<16x256xf32>
    %3 = tpu.matmul %1, %2, %cst {dimension_numbers = #tpu.dot_dimension_numbers<[1], [0], [0], [1], [0, 0, 1, 1], [], []>} : vector<16x32xbf16>, vector<32x256xbf16>, vector<16x256xf32> -> vector<16x256xf32>
    %c0_3 = arith.constant 0 : index
    %c0_4 = arith.constant 0 : index
    %4 = vector.load %arg3[%c0_3, %c0_4] : memref<1x256xf32, #tpu.memory_space<vmem>>, vector<1x256xf32>
    %5 = vector.broadcast %4 : vector<1x256xf32> to vector<16x256xf32>
    %6 = arith.addf %3, %5 : vector<16x256xf32>
    %7 = vector.extract_strided_slice %6 {offsets = [0, 0], sizes = [16, 128], strides = [1, 1]} : vector<16x256xf32> to vector<16x128xf32>
    %8 = tpu.iota {dimensions = array<i32: 1>} : vector<16x128xi32>
    %c30_i32 = arith.constant 30 : i32
    %9 = vector.broadcast %c30_i32 : i32 to vector<16x128xi32>
    %10 = arith.cmpi slt, %8, %9 : vector<16x128xi32>
    %cst_5 = arith.constant 0xFF800000 : f32
    %11 = vector.broadcast %cst_5 : f32 to vector<16x128xf32>
    %12 = arith.select %10, %7, %11 : vector<16x128xi1>, vector<16x128xf32>
    %cst_6 = arith.constant dense<0xFF800000> : vector<16xf32>
    %13 = vector.multi_reduction <maximumf>, %12, %cst_6 [1] : vector<16x128xf32> to vector<16xf32>
    %14 = vector.shape_cast %13 : vector<16xf32> to vector<16x1xf32>
    %15 = vector.broadcast %14 : vector<16x1xf32> to vector<16x128xf32>
    %16 = arith.subf %12, %15 : vector<16x128xf32>
    %17 = math.exp %16 : vector<16x128xf32>
    %cst_7 = arith.constant dense<0.000000e+00> : vector<16xf32>
    %18 = vector.multi_reduction <add>, %17, %cst_7 [1] : vector<16x128xf32> to vector<16xf32>
    %19 = vector.shape_cast %18 : vector<16xf32> to vector<16x1xf32>
    %20 = math.log %19 : vector<16x1xf32>
    %21 = vector.broadcast %14 : vector<16x1xf32> to vector<16x128xf32>
    %22 = arith.subf %7, %21 : vector<16x128xf32>
    %23 = vector.broadcast %20 : vector<16x1xf32> to vector<16x128xf32>
    %24 = arith.subf %22, %23 : vector<16x128xf32>
    %c0_8 = arith.constant 0 : index
    %c0_9 = arith.constant 0 : index
    %25 = vector.load %arg4[%c0_8, %c0_9] : memref<16x128xf32, #tpu.memory_space<vmem>>, vector<16x128xf32>
    tpu.vector_store %arg4[%c0_8, %c0_9], %24 {strides = array<i32>} : memref<16x128xf32, #tpu.memory_space<vmem>>, vector<16x128xf32>,
    %26 = vector.extract_strided_slice %6 {offsets = [0, 128], sizes = [16, 128], strides = [1, 1]} : vector<16x256xf32> to vector<16x128xf32>
    %27 = arith.truncf %26 : vector<16x128xf32> to vector<16x128xbf16>
    %c0_10 = arith.constant 0 : index
    %c0_11 = arith.constant 0 : index
    %28 = vector.load %arg5[%c0_10, %c0_11] : memref<16x128xbf16, #tpu.memory_space<vmem>>, vector<16x128xbf16>
    tpu.vector_store %arg5[%c0_10, %c0_11], %27 {strides = array<i32>} : memref<16x128xbf16, #tpu.memory_space<vmem>>, vector<16x128xbf16>,
    return
  }
  func.func @transform_0(%arg0: i32) -> (i32, i32) {
    %c0_i32 = arith.constant 0 : i32
    %c0_i32_0 = arith.constant 0 : i32
    return %arg0, %c0_i32 : i32, i32
  }
  func.func @transform_1(%arg0: i32) -> (i32, i32) {
    %c0_i32 = arith.constant 0 : i32
    %c0_i32_0 = arith.constant 0 : i32
    %c0_i32_1 = arith.constant 0 : i32
    return %c0_i32, %c0_i32_0 : i32, i32
  }
  func.func @transform_2(%arg0: i32) -> (i32, i32) {
    %c0_i32 = arith.constant 0 : i32
    %c0_i32_0 = arith.constant 0 : i32
    %c0_i32_1 = arith.constant 0 : i32
    return %c0_i32, %c0_i32_0 : i32, i32
  }
  func.func @transform_3(%arg0: i32) -> (i32, i32) {
    %c0_i32 = arith.constant 0 : i32
    %c0_i32_0 = arith.constant 0 : i32
    return %arg0, %c0_i32 : i32, i32
  }
  func.func @transform_4(%arg0: i32) -> (i32, i32) {
    %c0_i32 = arith.constant 0 : i32
    %c0_i32_0 = arith.constant 0 : i32
    return %arg0, %c0_i32 : i32, i32
  }
}

</mosaic_0001>

<llo_original>
// kernel: mdn_layer_forward.1
$region0: #{mdn_layer_forward.1}
  #allocation0 [shape = 'u32[]', space=smem, size = 0x4, offset = 0x4, fixed_abs, tag = 'smem constant byte address 0x4 - core index']
  #allocation1 [shape = 'u32[144,128]{1,0:T(1,128)}', space=vmem, size = 0x12000, scoped, tag = 'internal scratch']
  %s0 = inlined_call_operand.hbm [shape: f32[16,32], index: 0, kind: input, shape index: {}]
  %s1 = inlined_call_operand.hbm [shape: bf16[32,256], index: 1, kind: input, shape index: {}]
  %s2 = inlined_call_operand.vmem [shape: f32[1,256], index: 2, kind: input, shape index: {}]
  %s3 = inlined_call_operand.vmem [shape: f32[16,128], index: 3, kind: output, shape index: {0}]
  %s4 = inlined_call_operand.vmem [shape: bf16[16,128], index: 4, kind: output, shape index: {1}]
  %5 = xla_tuple %s3, %s4
  %s6 = sld [smem:[#allocation0]]
  $region38: #{mdn_layer_forward.1} parent=0
    _
  %s8 = ssub.s32 1, %s6
  %s9 = scalar_select 0, %s8, %s6
  $region1: #{mdn_layer_forward.1} parent=0
    #allocation2 [shape = 'u8[8192]{0}', space=vmem, size = 0x2000, scoped, tag = 'input window, operand 0, single buffered']
    #allocation3 [shape = 's32[1]{0}', space=sflag, size = 0x4, scoped, tag = 'scoped memory for mdn_layer_forward.1']
    #allocation4 [shape = 'u8[16384]{0}', space=vmem, size = 0x4000, scoped, tag = 'input window, operand 1, single buffered']
    #allocation5 [shape = 's32[1]{0}', space=sflag, size = 0x4, scoped, tag = 'scoped memory for mdn_layer_forward.1']
    %10 = vsyncpa [#allocation3], 0
    %11 = vsyncpa [#allocation5], 0
    // Predicated region
    $region2: #{mdn_layer_forward.1} parent=1 // pred_check
      _
    $region3: #{mdn_layer_forward.1} parent=1 // pred_check_branch
      %13 = sbr.rel (0) target = $region5
    $region4: #{mdn_layer_forward.1} parent=1 // pred_region
      %s15 = ssub.s32 256, 256
      %16 = vsyncadd [#allocation3], %s15
      %s17 = sshll.u32 [#allocation2], 4
      %s18 = int_to_ptr.vmem [resolvable:$true] %s17
      %23 = dma.hbm_to_vmem [thread:$0]  %s0, 256, %s18, [#allocation3], 128, 128, 8
    $region5: #{mdn_layer_forward.1} parent=1 // pred_fallthru
      _
    // Predicated region
    $region6: #{mdn_layer_forward.1} parent=1 // pred_check
      _
    $region7: #{mdn_layer_forward.1} parent=1 // pred_check_branch
      %25 = sbr.rel (0) target = $region9
    $region8: #{mdn_layer_forward.1} parent=1 // pred_region
      %s27 = ssub.s32 512, 512
      %28 = vsyncadd [#allocation5], %s27
      %s29 = sshll.u32 [#allocation4], 4
      %s30 = int_to_ptr.vmem [resolvable:$true] %s29
      %35 = dma.hbm_to_vmem [thread:$0]  %s1, 512, %s30, [#allocation5], 128, 128, 8
    $region9: #{mdn_layer_forward.1} parent=1 // pred_fallthru
      _
    // Predicated region
    $region10: #{mdn_layer_forward.1} parent=1 // pred_check
      _
    $region11: #{mdn_layer_forward.1} parent=1 // pred_check_branch
      %37 = sbr.rel (0) target = $region13
    $region12: #{mdn_layer_forward.1} parent=1 // pred_region
      _
    $region13: #{mdn_layer_forward.1} parent=1 // pred_fallthru
      _
    // Predicated region
    $region14: #{mdn_layer_forward.1} parent=1 // pred_check
      _
    $region15: #{mdn_layer_forward.1} parent=1 // pred_check_branch
      %39 = sbr.rel (0) target = $region17
    $region16: #{mdn_layer_forward.1} parent=1 // pred_region
      %40 = dma.done [#allocation3], 256
    $region17: #{mdn_layer_forward.1} parent=1 // pred_fallthru
      _
    // Predicated region
    $region18: #{mdn_layer_forward.1} parent=1 // pred_check
      _
    $region19: #{mdn_layer_forward.1} parent=1 // pred_check_branch
      %42 = sbr.rel (0) target = $region21
    $region20: #{mdn_layer_forward.1} parent=1 // pred_region
      %43 = dma.done [#allocation5], 512
    $region21: #{mdn_layer_forward.1} parent=1 // pred_fallthru
      _
    %v45 = vld [vmem:[#allocation2] sm:$0xff]
    %v46 = vld [vmem:[#allocation2 + $0x8] sm:$0xff]
    %v47 = vpack.c.bf16 %v46, %v45
    %v48 = vld [vmem:[#allocation4] sm:$0xff]
    %v49 = vld [vmem:[#allocation4 + $0x8] sm:$0xff]
    %v50 = vld [vmem:[#allocation4 + $0x10] sm:$0xff]
    %v51 = vld [vmem:[#allocation4 + $0x18] sm:$0xff]
    %v52 = vld [vmem:[%s2] sm:$0x3]
    %v54 = vlaneseq
    %v55 = vshrl.u32 %v54, 7
    %v56 = vsub.s32 0, %v55
    %v57 = vrot.slane %v52, %v56
    %v58 = vlaneseq
    %v59 = vshrl.u32 %v58, 7
    %v60 = vsub.s32 1, %v59
    %v61 = vrot.slane %v52, %v60
    %v68 = vunpack.c.l.b16 %v48
    %v69 = vunpack.c.h.b16 %v48
    %v70 = vunpack.c.l.b16 %v49
    %v71 = vunpack.c.h.b16 %v49
    %v72 = vunpack.c.l.b16 %v50
    %v73 = vunpack.c.h.b16 %v50
    %v74 = vunpack.c.l.b16 %v51
    %v75 = vunpack.c.h.b16 %v51
    %v76 = vpack.c.b16 %v70, %v68
    %v77 = vpack.c.b16 %v71, %v69
    %v78 = vpack.c.b16 %v74, %v72
    %v79 = vpack.c.b16 %v75, %v73
    %vm84 = vcmask 261120
    %v86 = vsel %vm84, %v47, 0
    %88 = vmatprep.subr.bf16.mxu0 %v77
    %89 = vmatpush1.bf16.msra.mxu0 %v76
    %90 = vmatprep.subr.bf16.mxu0 %v79
    %91 = vmatpush1.bf16.msra.mxu0 %v78
    %92 = vmatprep.subr.bf16.mxu0 0
    %93 = vmatpush1.bf16.msra.mxu0 0
    %94 = vmatprep.subr.bf16.mxu0 0
    %95 = vmatpush1.bf16.msra.mxu0 0
    %96 = vmatprep.subr.bf16.mxu0 0
    %97 = vmatpush1.bf16.msra.mxu0 0
    %98 = vmatprep.subr.bf16.mxu0 0
    %99 = vmatpush1.bf16.msra.mxu0 0
    %100 = vmatprep.subr.bf16.mxu0 0
    %101 = vmatpush1.bf16.msra.mxu0 0
    %102 = vmatprep.subr.bf16.mxu0 0
    %103 = vmatpush1.bf16.msra.mxu0 0
    %104 = vmatprep.subr.bf16.mxu0 0
    %105 = vmatpush1.bf16.msra.mxu0 0
    %106 = vmatprep.subr.bf16.mxu0 0
    %107 = vmatpush1.bf16.msra.mxu0 0
    %108 = vmatprep.subr.bf16.mxu0 0
    %109 = vmatpush1.bf16.msra.mxu0 0
    %110 = vmatprep.subr.bf16.mxu0 0
    %111 = vmatpush1.bf16.msra.mxu0 0
    %112 = vmatprep.subr.bf16.mxu0 0
    %113 = vmatpush1.bf16.msra.mxu0 0
    %114 = vmatprep.subr.bf16.mxu0 0
    %115 = vmatpush1.bf16.msra.mxu0 0
    %116 = vmatprep.subr.bf16.mxu0 0
    %117 = vmatpush1.bf16.msra.mxu0 0
    %118 = vmatprep.subr.bf16.mxu0 0
    %119 = vmatpush1.bf16.msra.mxu0 0
    %120 = vmatprep.mubr.bf16.mxu0 0
    %121 = vmatmul.mubr.bf16.gmra.mrb[0].mxu0 %v86
    %v122 = vpop.f32.mrb[0].mxu0
    %v123 = vadd.f32 %v57, %v122
    %v124 = vpop.f32.mrb[0].mxu0
    %v125 = vadd.f32 %v61, %v124
    %v126 = vpop.f32.mrb[0].mxu0
    %v127 = vadd.f32 %v57, %v126
    %v128 = vpop.f32.mrb[0].mxu0
    %v129 = vadd.f32 %v61, %v128
    %130 = vdwg.mxu0
    %v131 = vlaneseq
    %v132 = vand.u32 %v131, 127
    %vm133 = vcmp.lt.s32.totalorder %v132, 30
    %v134 = vsel %vm133, %v123, -inf
    %v135 = vsel %vm133, %v127, -inf
    %136 = vmax.xlane.f32.xlu0 %v134
    %v137 = vpop.xlane.xlu0 %136
    %138 = vmax.xlane.f32.xlu0 %v135
    %v139 = vpop.xlane.xlu0 %138
    %v140 = vsub.f32 %v134, %v137
    %v141 = vsub.f32 %v135, %v139
    %v142 = vmul.f32 %v140, 1.442695
    %v143 = vpow.pop %v142
    %v144 = vmul.f32 %v141, 1.442695
    %v145 = vpow.pop %v144
    %146 = vadd.xlane.f32.xlu0 %v143
    %v147 = vpop.xlane.xlu0 %146
    %148 = vadd.xlane.f32.xlu0 %v145
    %v149 = vpop.xlane.xlu0 %148
    %v150 = vlog2.pop %v147
    %v151 = vmul.f32 %v150, 0.6931472
    %v152 = vlog2.pop %v149
    %v153 = vmul.f32 %v152, 0.6931472
    %v154 = vsub.f32 %v123, %v137
    %v155 = vsub.f32 %v127, %v139
    %v156 = vsub.f32 %v154, %v151
    %v157 = vsub.f32 %v155, %v153
    %158 = vst [vmem:[%s3] sm:$0xff] %v156
    %159 = vst [vmem:[%s3 + $0x8] sm:$0xff] %v157
    %v160 = vpack.c.bf16 %v129, %v125
    %v162 = vunpack.c.l.b16 %v160
    %v163 = vunpack.c.h.b16 %v160
    %v164 = vpack.c.b16 %v162, %v162
    %v165 = vpack.c.b16 %v163, %v163
    %168 = vst [vmem:[%s4] sm:$0xf] %v164
    %169 = vst [vmem:[%s4 + $0x4] sm:$0xf] %v165
    // Predicated region
    $region22: #{mdn_layer_forward.1} parent=1 // pred_check
      _
    $region23: #{mdn_layer_forward.1} parent=1 // pred_check_branch
      %171 = sbr.rel (0) target = $region25
    $region24: #{mdn_layer_forward.1} parent=1 // pred_region
      _
    $region25: #{mdn_layer_forward.1} parent=1 // pred_fallthru
      _
    // Predicated region
    $region26: #{mdn_layer_forward.1} parent=1 // pred_check
      _
    $region27: #{mdn_layer_forward.1} parent=1 // pred_check_branch
      %173 = sbr.rel (0) target = $region29
    $region28: #{mdn_layer_forward.1} parent=1 // pred_region
      _
    $region29: #{mdn_layer_forward.1} parent=1 // pred_fallthru
      _
    // Predicated region
    $region30: #{mdn_layer_forward.1} parent=1 // pred_check
      _
    $region31: #{mdn_layer_forward.1} parent=1 // pred_check_branch
      %175 = sbr.rel (0) target = $region33
    $region32: #{mdn_layer_forward.1} parent=1 // pred_region
      _
    $region33: #{mdn_layer_forward.1} parent=1 // pred_fallthru
      _
    // Predicated region
    $region34: #{mdn_layer_forward.1} parent=1 // pred_check
      _
    $region35: #{mdn_layer_forward.1} parent=1 // pred_check_branch
      %177 = sbr.rel (0) target = $region37
    $region36: #{mdn_layer_forward.1} parent=1 // pred_region
      _
    $region37: #{mdn_layer_forward.1} parent=1 // pred_fallthru
      _
    %178 = vsyncpa [#allocation3], 1
    %179 = vsyncpa [#allocation5], 1

</llo_original>
